<compile_context>
chip_gen: v6e
topology: v6e:2x2x1
jax: 0.10.0
libtpu: 0.0.40
codegen_flags: <defaults>
</compile_context>

<pallas_src>
import functools

import jax
import jax.numpy as jnp
import numpy as np
from jax.experimental import pallas as pl
from jax.experimental.pallas import tpu as pltpu

IGNORE_INDEX = 255
SMOOTH_FACTOR = 0.05   # SoftCrossEntropyLoss label smoothing
DICE_SMOOTH = 0.05     # DiceLoss smooth
DICE_EPS = 1e-7        # DiceLoss eps


def _banet_loss_kernel(logits_ref, labels_ref, ce_ref, class_ref,
                       ce_acc, inter_acc, psum_acc, tsum_acc,
                       *, hw, tile_hw, ignore_index, smooth_factor):
    t = pl.program_id(1)

    # Zero the per-image accumulators at the first HW tile of every image.
    @pl.when(t == 0)
    def _():
        ce_acc[...] = jnp.zeros_like(ce_acc)
        inter_acc[...] = jnp.zeros_like(inter_acc)
        psum_acc[...] = jnp.zeros_like(psum_acc)
        tsum_acc[...] = jnp.zeros_like(tsum_acc)

    logits = logits_ref[...].astype(jnp.float32)        # (C, T)  classes x pixels
    labels = labels_ref[...]                            # (1, T)  int32
    c, tw = logits.shape

    valid = labels != ignore_index                      # (1, T)
    if hw % tile_hw != 0:
        # Ragged last tile: mask lanes past the true pixel count (hw is static).
        lane = jax.lax.broadcasted_iota(jnp.int32, (1, tw), 1)
        in_bounds = (t * tile_hw + lane) < hw
        valid = jnp.logical_and(valid, in_bounds)
        logits = jnp.where(in_bounds, logits, 0.0)      # keep exp/log finite
    valid_f = valid.astype(jnp.float32)                 # (1, T)
    labels_safe = jnp.where(valid, labels, -1)          # never matches a class id

    # Single-exp softmax statistics (sublane reduction over C).
    m = jnp.max(logits, axis=0, keepdims=True)          # (1, T)
    z = logits - m                                      # (C, T)
    e = jnp.exp(z)
    s = jnp.sum(e, axis=0, keepdims=True)               # (1, T)
    lse = jnp.log(s)                                    # (1, T)

    class_iota = jax.lax.broadcasted_iota(jnp.int32, (c, tw), 0)
    onehot = (class_iota == labels_safe).astype(jnp.float32)   # (C, T), masked

    z_label = jnp.sum(z * onehot, axis=0, keepdims=True)       # (1, T), masked
    zsum = jnp.sum(z, axis=0, keepdims=True)                   # (1, T)

    # SoftCrossEntropy per pixel with smoothing constants folded:
    #   (1-eps)*(lse - z_label) + (eps/C)*(C*lse - zsum)
    # = lse - (1-eps)*z_label - (eps/C)*zsum
    eps = smooth_factor
    ce_acc[...] += valid_f * (lse - (eps / c) * zsum) - (1.0 - eps) * z_label

    # --- Dice pieces (per class), accumulated densely per lane ---
    w = valid_f * pl.reciprocal(s, approx=False)        # (1, T)  mask * 1/sum(exp)
    probs_m = e * w                                      # (C, T)  masked softmax
    inter_acc[...] += probs_m * onehot
    psum_acc[...] += probs_m
    tsum_acc[...] += onehot

    # Single store of the tiny outputs, once per image.
    @pl.when(t == pl.num_programs(1) - 1)
    def _():
        ce_ref[...] = jnp.sum(ce_acc[...], axis=-1, keepdims=True)      # (1, 1)
        inter = jnp.sum(inter_acc[...], axis=-1, keepdims=True)         # (C, 1)
        psum = jnp.sum(psum_acc[...], axis=-1, keepdims=True)           # (C, 1)
        tsum = jnp.sum(tsum_acc[...], axis=-1, keepdims=True)           # (C, 1)
        class_ref[...] = jnp.concatenate([inter, psum, tsum], axis=-1)  # (C, 3)


@functools.partial(jax.jit, static_argnums=(2,))
def _banet_loss_impl(y_pred, y_true, tile_hw):
    n, c, h, w = y_pred.shape
    hw = h * w

    # Metadata-only reshapes for NCHW input: no transpose, no pad, no upcast.
    logits = jnp.reshape(y_pred, (n, c, hw))
    labels = jnp.reshape(y_true, (n, 1, hw)).astype(jnp.int32)

    if hw <= tile_hw:
        tile = hw                                   # full extent (any size is legal)
    else:
        tile = max((tile_hw // 128) * 128, 128)     # lane-aligned tile
    num_t = pl.cdiv(hw, tile)

    ce_out, class_out = pl.pallas_call(
        functools.partial(_banet_loss_kernel, hw=hw, tile_hw=tile,
                          ignore_index=IGNORE_INDEX, smooth_factor=SMOOTH_FACTOR),
        out_shape=(
            jax.ShapeDtypeStruct((n, 1, 1), jnp.float32),   # per-image CE sum
            jax.ShapeDtypeStruct((n, c, 3), jnp.float32),   # [inter, psum, tsum]
        ),
        grid_spec=pltpu.PrefetchScalarGridSpec(
            num_scalar_prefetch=0,
            grid=(n, num_t),
            in_specs=[
                pl.BlockSpec((None, c, tile), lambda b, t: (b, 0, t)),
                pl.BlockSpec((None, 1, tile), lambda b, t: (b, 0, t)),
            ],
            out_specs=(
                pl.BlockSpec((None, 1, 1), lambda b, t: (b, 0, 0)),
                pl.BlockSpec((None, c, 3), lambda b, t: (b, 0, 0)),
            ),
            scratch_shapes=[
                pltpu.VMEM((1, tile), jnp.float32),   # CE per-lane accumulator
                pltpu.VMEM((c, tile), jnp.float32),   # dice intersection accumulator
                pltpu.VMEM((c, tile), jnp.float32),   # dice prob-sum accumulator
                pltpu.VMEM((c, tile), jnp.float32),   # dice target-sum accumulator
            ],
        ),
        compiler_params=pltpu.CompilerParams(
            dimension_semantics=("parallel", "arbitrary")),
    )(logits, labels)

    # SoftCrossEntropy: mean over ALL pixels (ignored pixels contribute 0 to the
    # numerator but count in the denominator — label_smoothed_nll_loss semantics).
    p_total = n * hw
    ce = jnp.sum(ce_out) / p_total

    # DiceLoss (multiclass, from_logits, dims=(0,2) -> per-class, mean over classes).
    cls = jnp.sum(class_out, axis=0)                  # (C, 3)
    inter, psum, tsum = cls[:, 0], cls[:, 1], cls[:, 2]
    card = psum + tsum
    score = (2.0 * inter + DICE_SMOOTH) / jnp.maximum(card + DICE_SMOOTH, DICE_EPS)
    per_class = (1.0 - score) * (tsum > 0).astype(jnp.float32)
    dice = jnp.mean(per_class)

    # JointLoss(first_weight=1.0, second_weight=1.0)
    return ce + dice


def banet_loss(y_pred, y_true, *, tile_hw=2048):
    """y_pred: (N, C, H, W) float logits, y_true: (N, H, W) int labels (255 = ignore)."""
    return _banet_loss_impl(y_pred, y_true, tile_hw)


def _reference(y_pred, y_true):
    """Pure-JAX reference reproducing the PyTorch semantics."""
    n, c, h, w = y_pred.shape
    logits = jnp.transpose(y_pred, (0, 2, 3, 1)).reshape(-1, c)
    labels = y_true.reshape(-1)
    lprobs = jax.nn.log_softmax(logits, axis=-1)
    valid = labels != IGNORE_INDEX
    safe = jnp.where(valid, labels, 0)
    nll = -jnp.take_along_axis(lprobs, safe[:, None], axis=-1)[:, 0]
    smooth = -jnp.sum(lprobs, axis=-1)
    nll = jnp.where(valid, nll, 0.0)
    smooth = jnp.where(valid, smooth, 0.0)
    ce = (1.0 - SMOOTH_FACTOR) * nll.mean() + (SMOOTH_FACTOR / c) * smooth.mean()
    probs = jnp.exp(lprobs)
    onehot = jax.nn.one_hot(safe, c) * valid[:, None]
    probs_m = probs * valid[:, None]
    inter = jnp.sum(probs_m * onehot, axis=0)
    card = jnp.sum(probs_m + onehot, axis=0)
    score = (2.0 * inter + DICE_SMOOTH) / jnp.maximum(card + DICE_SMOOTH, DICE_EPS)
    per_class = (1.0 - score) * (jnp.sum(onehot, axis=0) > 0)
    return ce + per_class.mean()


if __name__ == "__main__":
    key = jax.random.PRNGKey(0)
    k1, k2, k3 = jax.random.split(key, 3)
    N, C, H, W = 2, 4, 16, 16
    y_pred = jax.random.normal(k1, (N, C, H, W), dtype=jnp.float32)
    y_true = jax.random.randint(k2, (N, H, W), 0, C, dtype=jnp.int32)
    ignore_mask = jax.random.bernoulli(k3, 0.1, (N, H, W))
    y_true = jnp.where(ignore_mask, IGNORE_INDEX, y_true)

    loss = jax.block_until_ready(banet_loss(y_pred, y_true))
    ref = jax.block_until_ready(_reference(y_pred, y_true))
    np.testing.assert_allclose(np.asarray(loss), np.asarray(ref), rtol=1e-5, atol=1e-5)
    print("KERNEL_OK")
</pallas_src>

<mosaic_0001>
module attributes {stable_mosaic.version = 11 : i64} {
  func.func @_banet_loss_kernel(%arg0: i32, %arg1: i32, %arg2: memref<1x4x256xf32, #tpu.memory_space<vmem>>, %arg3: memref<1x1x256xi32, #tpu.memory_space<vmem>>, %arg4: memref<1x1x1xf32, #tpu.memory_space<vmem>>, %arg5: memref<1x4x3xf32, #tpu.memory_space<vmem>>, %arg6: memref<1x256xf32, #tpu.memory_space<vmem>>, %arg7: memref<4x256xf32, #tpu.memory_space<vmem>>, %arg8: memref<4x256xf32, #tpu.memory_space<vmem>>, %arg9: memref<4x256xf32, #tpu.memory_space<vmem>>) attributes {dimension_semantics = [#tpu.dimension_semantics<parallel>, #tpu.dimension_semantics<arbitrary>], iteration_bounds = array<i64: 2, 1>, scalar_prefetch = 0 : i64, scratch_operands = 4 : i64, tpu.core_type = #tpu.core_type<tc>, window_params = [{transform_indices = @transform_0, window_bounds = array<i64: 1, 4, 256>}, {transform_indices = @transform_1, window_bounds = array<i64: 1, 1, 256>}, {transform_indices = @transform_2, window_bounds = array<i64: 1, 1, 1>}, {transform_indices = @transform_3, window_bounds = array<i64: 1, 4, 3>}]} {
    %c0_i32 = arith.constant 0 : i32
    %0 = arith.cmpi eq, %arg1, %c0_i32 : i32
    %1 = arith.extui %0 : i1 to i32
    %c0_i32_0 = arith.constant 0 : i32
    %2 = arith.cmpi ne, %1, %c0_i32_0 : i32
    scf.if %2 {
      %cst_29 = arith.constant 0.000000e+00 : f32
      %58 = vector.broadcast %cst_29 : f32 to vector<1x256xf32>
      %c0_30 = arith.constant 0 : index
      %c0_31 = arith.constant 0 : index
      %59 = vector.load %arg6[%c0_30, %c0_31] : memref<1x256xf32, #tpu.memory_space<vmem>>, vector<1x256xf32>
      tpu.vector_store %arg6[%c0_30, %c0_31], %58 {strides = array<i32>} : memref<1x256xf32, #tpu.memory_space<vmem>>, vector<1x256xf32>,
      %cst_32 = arith.constant 0.000000e+00 : f32
      %60 = vector.broadcast %cst_32 : f32 to vector<4x256xf32>
      %c0_33 = arith.constant 0 : index
      %c0_34 = arith.constant 0 : index
      %61 = vector.load %arg7[%c0_33, %c0_34] : memref<4x256xf32, #tpu.memory_space<vmem>>, vector<4x256xf32>
      tpu.vector_store %arg7[%c0_33, %c0_34], %60 {strides = array<i32>} : memref<4x256xf32, #tpu.memory_space<vmem>>, vector<4x256xf32>,
      %cst_35 = arith.constant 0.000000e+00 : f32
      %62 = vector.broadcast %cst_35 : f32 to vector<4x256xf32>
      %c0_36 = arith.constant 0 : index
      %c0_37 = arith.constant 0 : index
      %63 = vector.load %arg8[%c0_36, %c0_37] : memref<4x256xf32, #tpu.memory_space<vmem>>, vector<4x256xf32>
      tpu.vector_store %arg8[%c0_36, %c0_37], %62 {strides = array<i32>} : memref<4x256xf32, #tpu.memory_space<vmem>>, vector<4x256xf32>,
      %cst_38 = arith.constant 0.000000e+00 : f32
      %64 = vector.broadcast %cst_38 : f32 to vector<4x256xf32>
      %c0_39 = arith.constant 0 : index
      %c0_40 = arith.constant 0 : index
      %65 = vector.load %arg9[%c0_39, %c0_40] : memref<4x256xf32, #tpu.memory_space<vmem>>, vector<4x256xf32>
      tpu.vector_store %arg9[%c0_39, %c0_40], %64 {strides = array<i32>} : memref<4x256xf32, #tpu.memory_space<vmem>>, vector<4x256xf32>,
    } else {
    }
    %c0 = arith.constant 0 : index
    %c0_1 = arith.constant 0 : index
    %c0_2 = arith.constant 0 : index
    %3 = vector.load %arg2[%c0, %c0_1, %c0_2] : memref<1x4x256xf32, #tpu.memory_space<vmem>>, vector<1x4x256xf32>
    %4 = vector.shape_cast %3 : vector<1x4x256xf32> to vector<4x256xf32>
    %c0_3 = arith.constant 0 : index
    %c0_4 = arith.constant 0 : index
    %c0_5 = arith.constant 0 : index
    %5 = vector.load %arg3[%c0_3, %c0_4, %c0_5] : memref<1x1x256xi32, #tpu.memory_space<vmem>>, vector<1x1x256xi32>
    %6 = vector.shape_cast %5 : vector<1x1x256xi32> to vector<1x256xi32>
    %c255_i32 = arith.constant 255 : i32
    %7 = vector.broadcast %c255_i32 : i32 to vector<1x256xi32>
    %8 = arith.cmpi ne, %6, %7 : vector<1x256xi32>
    %9 = arith.extui %8 : vector<1x256xi1> to vector<1x256xi32>
    %10 = arith.sitofp %9 : vector<1x256xi32> to vector<1x256xf32>
    %c-1_i32 = arith.constant -1 : i32
    %11 = vector.broadcast %c-1_i32 : i32 to vector<1x256xi32>
    %12 = arith.select %8, %6, %11 : vector<1x256xi1>, vector<1x256xi32>
    %cst = arith.constant dense<0xFF800000> : vector<256xf32>
    %13 = vector.multi_reduction <maximumf>, %4, %cst [0] : vector<4x256xf32> to vector<256xf32>
    %14 = vector.shape_cast %13 : vector<256xf32> to vector<1x256xf32>
    %15 = vector.broadcast %14 : vector<1x256xf32> to vector<4x256xf32>
    %16 = arith.subf %4, %15 : vector<4x256xf32>
    %17 = math.exp %16 : vector<4x256xf32>
    %cst_6 = arith.constant dense<0.000000e+00> : vector<256xf32>
    %18 = vector.multi_reduction <add>, %17, %cst_6 [0] : vector<4x256xf32> to vector<256xf32>
    %19 = vector.shape_cast %18 : vector<256xf32> to vector<1x256xf32>
    %20 = math.log %19 : vector<1x256xf32>
    %21 = tpu.iota {dimensions = array<i32: 0>} : vector<4x256xi32>
    %22 = vector.broadcast %12 : vector<1x256xi32> to vector<4x256xi32>
    %23 = arith.cmpi eq, %21, %22 : vector<4x256xi32>
    %24 = arith.extui %23 : vector<4x256xi1> to vector<4x256xi32>
    %25 = arith.sitofp %24 : vector<4x256xi32> to vector<4x256xf32>
    %26 = arith.mulf %16, %25 : vector<4x256xf32>
    %cst_7 = arith.constant dense<0.000000e+00> : vector<256xf32>
    %27 = vector.multi_reduction <add>, %26, %cst_7 [0] : vector<4x256xf32> to vector<256xf32>
    %28 = vector.shape_cast %27 : vector<256xf32> to vector<1x256xf32>
    %cst_8 = arith.constant dense<0.000000e+00> : vector<256xf32>
    %29 = vector.multi_reduction <add>, %16, %cst_8 [0] : vector<4x256xf32> to vector<256xf32>
    %30 = vector.shape_cast %29 : vector<256xf32> to vector<1x256xf32>
    %c0_9 = arith.constant 0 : index
    %c0_10 = arith.constant 0 : index
    %31 = vector.load %arg6[%c0_9, %c0_10] : memref<1x256xf32, #tpu.memory_space<vmem>>, vector<1x256xf32>
    %cst_11 = arith.constant 1.250000e-02 : f32
    %32 = vector.broadcast %cst_11 : f32 to vector<1x256xf32>
    %33 = arith.mulf %32, %30 : vector<1x256xf32>
    %34 = arith.subf %20, %33 : vector<1x256xf32>
    %35 = arith.mulf %10, %34 : vector<1x256xf32>
    %cst_12 = arith.constant 0.949999988 : f32
    %36 = vector.broadcast %cst_12 : f32 to vector<1x256xf32>
    %37 = arith.mulf %36, %28 : vector<1x256xf32>
    %38 = arith.subf %35, %37 : vector<1x256xf32>
    %39 = arith.addf %31, %38 : vector<1x256xf32>
    %c0_13 = arith.constant 0 : index
    %c0_14 = arith.constant 0 : index
    %40 = vector.load %arg6[%c0_13, %c0_14] : memref<1x256xf32, #tpu.memory_space<vmem>>, vector<1x256xf32>
    tpu.vector_store %arg6[%c0_13, %c0_14], %39 {strides = array<i32>} : memref<1x256xf32, #tpu.memory_space<vmem>>, vector<1x256xf32>,
    %41 = tpu.reciprocal %19 : vector<1x256xf32> -> vector<1x256xf32>
    %42 = arith.mulf %10, %41 : vector<1x256xf32>
    %43 = vector.broadcast %42 : vector<1x256xf32> to vector<4x256xf32>
    %44 = arith.mulf %17, %43 : vector<4x256xf32>
    %c0_15 = arith.constant 0 : index
    %c0_16 = arith.constant 0 : index
    %45 = vector.load %arg7[%c0_15, %c0_16] : memref<4x256xf32, #tpu.memory_space<vmem>>, vector<4x256xf32>
    %46 = arith.mulf %44, %25 : vector<4x256xf32>
    %47 = arith.addf %45, %46 : vector<4x256xf32>
    %c0_17 = arith.constant 0 : index
    %c0_18 = arith.constant 0 : index
    %48 = vector.load %arg7[%c0_17, %c0_18] : memref<4x256xf32, #tpu.memory_space<vmem>>, vector<4x256xf32>
    tpu.vector_store %arg7[%c0_17, %c0_18], %47 {strides = array<i32>} : memref<4x256xf32, #tpu.memory_space<vmem>>, vector<4x256xf32>,
    %c0_19 = arith.constant 0 : index
    %c0_20 = arith.constant 0 : index
    %49 = vector.load %arg8[%c0_19, %c0_20] : memref<4x256xf32, #tpu.memory_space<vmem>>, vector<4x256xf32>
    %50 = arith.addf %49, %44 : vector<4x256xf32>
    %c0_21 = arith.constant 0 : index
    %c0_22 = arith.constant 0 : index
    %51 = vector.load %arg8[%c0_21, %c0_22] : memref<4x256xf32, #tpu.memory_space<vmem>>, vector<4x256xf32>
    tpu.vector_store %arg8[%c0_21, %c0_22], %50 {strides = array<i32>} : memref<4x256xf32, #tpu.memory_space<vmem>>, vector<4x256xf32>,
    %c0_23 = arith.constant 0 : index
    %c0_24 = arith.constant 0 : index
    %52 = vector.load %arg9[%c0_23, %c0_24] : memref<4x256xf32, #tpu.memory_space<vmem>>, vector<4x256xf32>
    %53 = arith.addf %52, %25 : vector<4x256xf32>
    %c0_25 = arith.constant 0 : index
    %c0_26 = arith.constant 0 : index
    %54 = vector.load %arg9[%c0_25, %c0_26] : memref<4x256xf32, #tpu.memory_space<vmem>>, vector<4x256xf32>
    tpu.vector_store %arg9[%c0_25, %c0_26], %53 {strides = array<i32>} : memref<4x256xf32, #tpu.memory_space<vmem>>, vector<4x256xf32>,
    %c0_i32_27 = arith.constant 0 : i32
    %55 = arith.cmpi eq, %arg1, %c0_i32_27 : i32
    %56 = arith.extui %55 : i1 to i32
    %c0_i32_28 = arith.constant 0 : i32
    %57 = arith.cmpi ne, %56, %c0_i32_28 : i32
    scf.if %57 {
      %c0_29 = arith.constant 0 : index
      %c0_30 = arith.constant 0 : index
      %58 = vector.load %arg6[%c0_29, %c0_30] : memref<1x256xf32, #tpu.memory_space<vmem>>, vector<1x256xf32>
      %cst_31 = arith.constant dense<0.000000e+00> : vector<1xf32>
      %59 = vector.multi_reduction <add>, %58, %cst_31 [1] : vector<1x256xf32> to vector<1xf32>
      %60 = vector.shape_cast %59 : vector<1xf32> to vector<1x1xf32>
      %c0_32 = arith.constant 0 : index
      %c0_33 = arith.constant 0 : index
      %c0_34 = arith.constant 0 : index
      %61 = vector.load %arg4[%c0_32, %c0_33, %c0_34] : memref<1x1x1xf32, #tpu.memory_space<vmem>>, vector<1x1x1xf32>
      %62 = vector.shape_cast %61 : vector<1x1x1xf32> to vector<1x1xf32>
      %63 = vector.shape_cast %60 : vector<1x1xf32> to vector<1x1x1xf32>
      tpu.vector_store %arg4[%c0_32, %c0_33, %c0_34], %63 {strides = array<i32>} : memref<1x1x1xf32, #tpu.memory_space<vmem>>, vector<1x1x1xf32>,
      %c0_35 = arith.constant 0 : index
      %c0_36 = arith.constant 0 : index
      %64 = vector.load %arg7[%c0_35, %c0_36] : memref<4x256xf32, #tpu.memory_space<vmem>>, vector<4x256xf32>
      %cst_37 = arith.constant dense<0.000000e+00> : vector<4xf32>
      %65 = vector.multi_reduction <add>, %64, %cst_37 [1] : vector<4x256xf32> to vector<4xf32>
      %66 = vector.shape_cast %65 : vector<4xf32> to vector<4x1xf32>
      %c0_38 = arith.constant 0 : index
      %c0_39 = arith.constant 0 : index
      %67 = vector.load %arg8[%c0_38, %c0_39] : memref<4x256xf32, #tpu.memory_space<vmem>>, vector<4x256xf32>
      %cst_40 = arith.constant dense<0.000000e+00> : vector<4xf32>
      %68 = vector.multi_reduction <add>, %67, %cst_40 [1] : vector<4x256xf32> to vector<4xf32>
      %69 = vector.shape_cast %68 : vector<4xf32> to vector<4x1xf32>
      %c0_41 = arith.constant 0 : index
      %c0_42 = arith.constant 0 : index
      %70 = vector.load %arg9[%c0_41, %c0_42] : memref<4x256xf32, #tpu.memory_space<vmem>>, vector<4x256xf32>
      %cst_43 = arith.constant dense<0.000000e+00> : vector<4xf32>
      %71 = vector.multi_reduction <add>, %70, %cst_43 [1] : vector<4x256xf32> to vector<4xf32>
      %72 = vector.shape_cast %71 : vector<4xf32> to vector<4x1xf32>
      %73 = tpu.concatenate %66, %69, %72 in 1 : vector<4x1xf32>, vector<4x1xf32>, vector<4x1xf32> -> vector<4x3xf32>
      %c0_44 = arith.constant 0 : index
      %c0_45 = arith.constant 0 : index
      %c0_46 = arith.constant 0 : index
      %74 = vector.load %arg5[%c0_44, %c0_45, %c0_46] : memref<1x4x3xf32, #tpu.memory_space<vmem>>, vector<1x4x3xf32>
      %75 = vector.shape_cast %74 : vector<1x4x3xf32> to vector<4x3xf32>
      %76 = vector.shape_cast %73 : vector<4x3xf32> to vector<1x4x3xf32>
      tpu.vector_store %arg5[%c0_44, %c0_45, %c0_46], %76 {strides = array<i32>} : memref<1x4x3xf32, #tpu.memory_space<vmem>>, vector<1x4x3xf32>,
    } else {
    }
    return
  }
  func.func @transform_0(%arg0: i32, %arg1: i32) -> (i32, i32, i32) {
    %c0_i32 = arith.constant 0 : i32
    %c0_i32_0 = arith.constant 0 : i32
    return %arg0, %c0_i32, %arg1 : i32, i32, i32
  }
  func.func @transform_1(%arg0: i32, %arg1: i32) -> (i32, i32, i32) {
    %c0_i32 = arith.constant 0 : i32
    %c0_i32_0 = arith.constant 0 : i32
    return %arg0, %c0_i32, %arg1 : i32, i32, i32
  }
  func.func @transform_2(%arg0: i32, %arg1: i32) -> (i32, i32, i32) {
    %c0_i32 = arith.constant 0 : i32
    %c0_i32_0 = arith.constant 0 : i32
    %c0_i32_1 = arith.constant 0 : i32
    return %arg0, %c0_i32, %c0_i32_0 : i32, i32, i32
  }
  func.func @transform_3(%arg0: i32, %arg1: i32) -> (i32, i32, i32) {
    %c0_i32 = arith.constant 0 : i32
    %c0_i32_0 = arith.constant 0 : i32
    %c0_i32_1 = arith.constant 0 : i32
    return %arg0, %c0_i32, %c0_i32_0 : i32, i32, i32
  }
}

</mosaic_0001>

<llo_original>
// kernel: _banet_loss_impl.1
$region0: #{_banet_loss_impl.1}
  #allocation0 [shape = 'u32[]', space=smem, size = 0x4, offset = 0x4, fixed_abs, tag = 'smem constant byte address 0x4 - core index']
  #allocation1 [shape = 'u32[144,128]{1,0:T(1,128)}', space=vmem, size = 0x12000, scoped, tag = 'internal scratch']
  #allocation2 [shape = 'f32[1,256]{1,0:T(1,128)}', space=vmem, size = 0x400, scoped, tag = 'scratch operand']
  #allocation3 [shape = 'f32[4,256]{1,0:T(4,128)}', space=vmem, size = 0x1000, scoped, tag = 'scratch operand']
  #allocation4 [shape = 'f32[4,256]{1,0:T(4,128)}', space=vmem, size = 0x1000, scoped, tag = 'scratch operand']
  #allocation5 [shape = 'f32[4,256]{1,0:T(4,128)}', space=vmem, size = 0x1000, scoped, tag = 'scratch operand']
  %s0 = inlined_call_operand.vmem [shape: f32[2,4,256], index: 0, kind: input, shape index: {}]
  %s1 = inlined_call_operand.vmem [shape: s32[2,1,256], index: 1, kind: input, shape index: {}]
  %s2 = inlined_call_operand.vmem [shape: f32[2,1,1], index: 2, kind: output, shape index: {0}]
  %s3 = inlined_call_operand.vmem [shape: f32[2,4,3], index: 3, kind: output, shape index: {1}]
  %4 = xla_tuple %s2, %s3
  %s5 = sld [smem:[#allocation0]]
  $region57: #{_banet_loss_impl.1} parent=0
    _
  %s7 = ssub.s32 1, %s5
  %s8 = scalar_select 0, %s7, %s5
  loop: start=0, step=1, limit=4
  $region2: #{_banet_loss_impl.1} parent=0 // loop_pre_header
    _
  $region3: #{_banet_loss_impl.1} parent=0 // loop_header
    %s10 = sphi 0, %s14
    %p11 = scmp.ge.s32.totalorder %s10, 4
    %s17 = sphi 0, %s29
    %s18 = sphi 0, %s25
    %s19 = sphi 0, %s17
    %s20 = sphi 0, %s18
    %s21 = sphi 0, %s19
    %s22 = sphi 0, %s20
    %s34 = sphi 0, %s36
    %s37 = sphi 0, %s34
    %s38 = sphi 0, %s37
    %s54 = sphi 0, %s38
    %s62 = sphi 0, %s64
    %s65 = sphi 0, %s62
    %s66 = sphi 0, %s65
    %s82 = sphi 0, %s66
    %s88 = sphi 0, %s90
    %s91 = sphi 0, %s88
    %s92 = sphi 0, %s91
    %s108 = sphi 0, %s92
    %s114 = sphi 0, %s116
    %s117 = sphi 0, %s114
    %s118 = sphi 0, %s117
    %s134 = sphi 0, %s118
  $region4: #{_banet_loss_impl.1} parent=0 // loop_header_branch
    %13 = sbr.rel (%p11) target = $region8
  $region5: #{_banet_loss_impl.1} parent=0 // loop_body
    %s15 = ssub.s32 %s10, 1
    %s16 = ssub.s32 %s10, 2
    %s23 = sadd.s32 1, %s18
    %p24 = scmp.ge.s32.totalorder %s23, 1
    %s25 = scalar_select %p24, 0, %s23
    %s26 = sadd.s32 1, %s17
    %s27 = scalar_select %p24, %s26, %s17
    %p28 = scmp.ge.s32.totalorder %s27, 2
    %s29 = scalar_select %p28, 0, %s27
    %s30 = ssub.s32 %s17, %s29
    %s31 = ssub.s32 %s18, %s25
    %s32 = sor.u32 %s30, %s31
    %p33 = scmp.eq.s32.totalorder %s32, 0
    %s35 = sadd.s32 %s34, 1
    %s36 = scalar_select %p33, %s34, %s35
    %p39 = pneg %p33
    %p40 = scmp.eq.s32.totalorder %s10, 1
    %p41 = por %p39, %p40
    %p42 = scmp.ne.s32.totalorder %s34, %s37
    %p43 = scmp.eq.s32.totalorder %s10, 0
    %p44 = por %p42, %p43
    %p45 = scmp.ne.s32.totalorder %s34, %s37
    %p46 = scmp.eq.s32.totalorder %s15, 1
    %p47 = por %p45, %p46
    %p48 = scmp.ne.s32.totalorder %s37, %s38
    %p49 = scmp.eq.s32.totalorder %s15, 0
    %p50 = por %p48, %p49
    %p51 = scmp.ne.s32.totalorder %s37, %s38
    %p52 = scmp.eq.s32.totalorder %s16, 1
    %p53 = por %p51, %p52
    %p55 = scmp.ne.s32.totalorder %s38, %s54
    %p56 = scmp.eq.s32.totalorder %s16, 0
    %p57 = por %p55, %p56
    %s58 = ssub.s32 %s17, %s29
    %s59 = ssub.s32 %s18, %s25
    %s60 = sor.u32 %s58, %s59
    %p61 = scmp.eq.s32.totalorder %s60, 0
    %s63 = sadd.s32 %s62, 1
    %s64 = scalar_select %p61, %s62, %s63
    %p67 = pneg %p61
    %p68 = scmp.eq.s32.totalorder %s10, 1
    %p69 = por %p67, %p68
    %p70 = scmp.ne.s32.totalorder %s62, %s65
    %p71 = scmp.eq.s32.totalorder %s10, 0
    %p72 = por %p70, %p71
    %p73 = scmp.ne.s32.totalorder %s62, %s65
    %p74 = scmp.eq.s32.totalorder %s15, 1
    %p75 = por %p73, %p74
    %p76 = scmp.ne.s32.totalorder %s65, %s66
    %p77 = scmp.eq.s32.totalorder %s15, 0
    %p78 = por %p76, %p77
    %p79 = scmp.ne.s32.totalorder %s65, %s66
    %p80 = scmp.eq.s32.totalorder %s16, 1
    %p81 = por %p79, %p80
    %p83 = scmp.ne.s32.totalorder %s66, %s82
    %p84 = scmp.eq.s32.totalorder %s16, 0
    %p85 = por %p83, %p84
    %s86 = ssub.s32 %s17, %s29
    %p87 = scmp.eq.s32.totalorder %s86, 0
    %s89 = sadd.s32 %s88, 1
    %s90 = scalar_select %p87, %s88, %s89
    %p93 = pneg %p87
    %p94 = scmp.eq.s32.totalorder %s10, 1
    %p95 = por %p93, %p94
    %p96 = scmp.ne.s32.totalorder %s88, %s91
    %p97 = scmp.eq.s32.totalorder %s10, 0
    %p98 = por %p96, %p97
    %p99 = scmp.ne.s32.totalorder %s88, %s91
    %p100 = scmp.eq.s32.totalorder %s15, 1
    %p101 = por %p99, %p100
    %p102 = scmp.ne.s32.totalorder %s91, %s92
    %p103 = scmp.eq.s32.totalorder %s15, 0
    %p104 = por %p102, %p103
    %p105 = scmp.ne.s32.totalorder %s91, %s92
    %p106 = scmp.eq.s32.totalorder %s16, 1
    %p107 = por %p105, %p106
    %p109 = scmp.ne.s32.totalorder %s92, %s108
    %p110 = scmp.eq.s32.totalorder %s16, 0
    %p111 = por %p109, %p110
    %s112 = ssub.s32 %s17, %s29
    %p113 = scmp.eq.s32.totalorder %s112, 0
    %s115 = sadd.s32 %s114, 1
    %s116 = scalar_select %p113, %s114, %s115
    %p119 = pneg %p113
    %p120 = scmp.eq.s32.totalorder %s10, 1
    %p121 = por %p119, %p120
    %p122 = scmp.ne.s32.totalorder %s114, %s117
    %p123 = scmp.eq.s32.totalorder %s10, 0
    %p124 = por %p122, %p123
    %p125 = scmp.ne.s32.totalorder %s114, %s117
    %p126 = scmp.eq.s32.totalorder %s15, 1
    %p127 = por %p125, %p126
    %p128 = scmp.ne.s32.totalorder %s117, %s118
    %p129 = scmp.eq.s32.totalorder %s15, 0
    %p130 = por %p128, %p129
    %p131 = scmp.ne.s32.totalorder %s117, %s118
    %p132 = scmp.eq.s32.totalorder %s16, 1
    %p133 = por %p131, %p132
    %p135 = scmp.ne.s32.totalorder %s118, %s134
    %p136 = scmp.eq.s32.totalorder %s16, 0
    %p137 = por %p135, %p136
    %p138 = scmp.le.s32.totalorder 1, %s10
    %p139 = scmp.lt.s32.totalorder %s10, 3
    %p140 = pnand %p138, %p139
    %p141 = pneg %p140
    // Predicated region
    $region9: #{_banet_loss_impl.1} parent=5 // pred_check
      _
    $region10: #{_banet_loss_impl.1} parent=5 // pred_check_branch
      %143 = sbr.rel (%p140) target = $region12
    $region11: #{_banet_loss_impl.1} parent=5 // pred_region
      %s144 = ssub.s32 %s10, 1
    $region12: #{_banet_loss_impl.1} parent=5 // pred_fallthru
      _
    %p145 = scmp.lt.s32.totalorder %s10, 2
    // Predicated region
    $region13: #{_banet_loss_impl.1} parent=5 // pred_check
      %p146 = pneg %p145
    $region14: #{_banet_loss_impl.1} parent=5 // pred_check_branch
      %148 = sbr.rel (%p146) target = $region16
    $region15: #{_banet_loss_impl.1} parent=5 // pred_region
      // Predicated region
      $region17: #{_banet_loss_impl.1} parent=15 // pred_check
        %p149 = pneg %p44
      $region18: #{_banet_loss_impl.1} parent=15 // pred_check_branch
        %151 = sbr.rel (%p149) target = $region20
      $region19: #{_banet_loss_impl.1} parent=15 // pred_region
        %s152 = smul.u32 2, %s18
        %p153 = scmp.lt.s32.totalorder %s17, 1
        %s154 = scalar_select %p153, %s17, 1
        %p155 = scmp.lt.s32.totalorder %s152, 1
        %s156 = scalar_select %p155, %s152, 1
        %s157 = smul.addr %s154, 2
        %s158 = sadd.s32 %s156, %s157
        %s159 = smul.addr %s158, 4
        %s160 = scalar_lea.vmem %s0, %s159
        %s161 = smul.u32 2, %s18
      $region20: #{_banet_loss_impl.1} parent=15 // pred_fallthru
        _
      // Predicated region
      $region21: #{_banet_loss_impl.1} parent=15 // pred_check
        %p162 = pneg %p72
      $region22: #{_banet_loss_impl.1} parent=15 // pred_check_branch
        %164 = sbr.rel (%p162) target = $region24
      $region23: #{_banet_loss_impl.1} parent=15 // pred_region
        %s165 = smul.u32 2, %s18
        %p166 = scmp.lt.s32.totalorder %s17, 1
        %s167 = scalar_select %p166, %s17, 1
        %p168 = scmp.lt.s32.totalorder %s165, 1
        %s169 = scalar_select %p168, %s165, 1
        %s170 = smul.addr %s167, 2
        %s171 = sadd.s32 %s169, %s170
        %s172 = scalar_lea.vmem %s1, %s171
        %s173 = smul.u32 2, %s18
      $region24: #{_banet_loss_impl.1} parent=15 // pred_fallthru
        _
    $region16: #{_banet_loss_impl.1} parent=5 // pred_fallthru
      _
    %p174 = scmp.le.s32.totalorder 1, %s10
    %p175 = scmp.lt.s32.totalorder %s10, 3
    %p176 = pnand %p174, %p175
    %p177 = pneg %p176
    // Predicated region
    $region25: #{_banet_loss_impl.1} parent=5 // pred_check
      _
    $region26: #{_banet_loss_impl.1} parent=5 // pred_check_branch
      %179 = sbr.rel (%p176) target = $region28
    $region27: #{_banet_loss_impl.1} parent=5 // pred_region
      %s180 = ssub.s32 %s10, 1
      %s181 = smul.u32 2, %s20
      %p182 = scmp.lt.s32.totalorder %s19, 1
      %s183 = scalar_select %p182, %s19, 1
      %p184 = scmp.lt.s32.totalorder %s181, 1
      %s185 = scalar_select %p184, %s181, 1
      %s186 = smul.addr %s183, 2
      %s187 = sadd.s32 %s185, %s186
      %s188 = smul.addr %s187, 4
      %s189 = scalar_lea.vmem %s0, %s188
      %p190 = pneg %p50
      %p191 = pneg %p47
      %s192 = smul.u32 2, %s20
      %p193 = scmp.lt.s32.totalorder %s19, 1
      %s194 = scalar_select %p193, %s19, 1
      %p195 = scmp.lt.s32.totalorder %s192, 1
      %s196 = scalar_select %p195, %s192, 1
      %s197 = smul.addr %s194, 2
      %s198 = sadd.s32 %s196, %s197
      %s199 = scalar_lea.vmem %s1, %s198
      %p200 = pneg %p78
      %p201 = pneg %p75
      %p202 = pneg %p104
      %p203 = pneg %p101
      %p204 = scmp.lt.s32.totalorder %s19, 1
      %s205 = scalar_select %p204, %s19, 1
      %s206 = scalar_lea.vmem %s2, %s205
      %p207 = pneg %p130
      %p208 = pneg %p127
      %p209 = scmp.lt.s32.totalorder %s19, 1
      %s210 = scalar_select %p209, %s19, 1
      %s211 = smul.addr %s210, 4
      %s212 = scalar_lea.vmem %s3, %s211
      %s213 = smul.u32 2, %s20
      %p214 = scmp.lt.s32.totalorder %s19, 1
      %s215 = scalar_select %p214, %s19, 1
      %p216 = scmp.lt.s32.totalorder %s213, 1
      %s217 = scalar_select %p216, %s213, 1
      %s218 = smul.addr %s215, 2
      %s219 = sadd.s32 %s217, %s218
      %s220 = smul.addr %s219, 4
      %s221 = scalar_lea.vmem %s0, %s220
      %s222 = smul.u32 2, %s20
      %s223 = smul.u32 2, %s20
      %p224 = scmp.lt.s32.totalorder %s19, 1
      %s225 = scalar_select %p224, %s19, 1
      %p226 = scmp.lt.s32.totalorder %s223, 1
      %s227 = scalar_select %p226, %s223, 1
      %s228 = smul.addr %s225, 2
      %s229 = sadd.s32 %s227, %s228
      %s230 = scalar_lea.vmem %s1, %s229
      %s231 = smul.u32 2, %s20
      %p232 = scmp.lt.s32.totalorder %s19, 1
      %s233 = scalar_select %p232, %s19, 1
      %s234 = scalar_lea.vmem %s2, %s233
      %p235 = scmp.lt.s32.totalorder %s19, 1
      %s236 = scalar_select %p235, %s19, 1
      %s237 = smul.addr %s236, 4
      %s238 = scalar_lea.vmem %s3, %s237
      %p239 = scmp.eq.s32.totalorder %s20, 0
      // Predicated region
      $region29: #{_banet_loss_impl.1} parent=27 // pred_check
        %p240 = pneg %p239
      $region30: #{_banet_loss_impl.1} parent=27 // pred_check_branch
        %242 = sbr.rel (%p240) target = $region32
      $region31: #{_banet_loss_impl.1} parent=27 // pred_region
        %v243 = vlaneseq
        %vm244 = vcmp.ge.s32.totalorder %v243, 0
        %vm245 = vcmp.lt.s32.totalorder %v243, 256
        %vm246 = vmand %vm244, %vm245
        %247 = vst.msk [vmem:[#allocation2] sm:$0x3] %vm246, 0.0
        %248 = vst [vmem:[#allocation3] sm:$0xff] 0.0
        %249 = vst [vmem:[#allocation4] sm:$0xff] 0.0
        %250 = vst [vmem:[#allocation5] sm:$0xff] 0.0
      $region32: #{_banet_loss_impl.1} parent=27 // pred_fallthru
        _
      %v251 = vld [vmem:[%s221] sm:$0xff]
      %v252 = vld [vmem:[%s230] sm:$0x3]
      %vm253 = vcmp.ne.s32.totalorder %v252, 255
      %v254 = vsel %vm253, 1, 0
      %v255 = vcvt.s32.f32 %v254
      %v256 = vsel %vm253, %v252, 4294967295
      %v258 = vcombine.high %v251, %v251
      %vm260 = vcmask 1043456
      %v261 = vsel %vm260, %v251, -inf
      %v262 = vrot.slane %v261, 4
      %v263 = vmax.f32 %v261, %v262
      %v264 = vrot.slane %v263, 2
      %v265 = vmax.f32 %v263, %v264
      %v266 = vrot.slane %v265, 1
      %v267 = vmax.f32 %v265, %v266
      %v268 = vsel %vm260, %v258, -inf
      %v269 = vrot.slane %v268, 4
      %v270 = vmax.f32 %v268, %v269
      %v271 = vrot.slane %v270, 2
      %v272 = vmax.f32 %v270, %v271
      %v273 = vrot.slane %v272, 1
      %v274 = vmax.f32 %v272, %v273
      %v277 = vcombine.low %v267, %v274
      %v279 = vsub.f32 %v251, %v277
      %v280 = vmul.f32 %v279, 1.442695
      %v281 = vpow.pop %v280
      %v283 = vcombine.high %v281, %v281
      %v285 = vsel %vm260, %v281, 0.0
      %v286 = vrot.slane %v285, 4
      %v287 = vadd.f32 %v285, %v286
      %v288 = vrot.slane %v287, 2
      %v289 = vadd.f32 %v287, %v288
      %v290 = vrot.slane %v289, 1
      %v291 = vadd.f32 %v289, %v290
      %v292 = vsel %vm260, %v283, 0.0
      %v293 = vrot.slane %v292, 4
      %v294 = vadd.f32 %v292, %v293
      %v295 = vrot.slane %v294, 2
      %v296 = vadd.f32 %v294, %v295
      %v297 = vrot.slane %v296, 1
      %v298 = vadd.f32 %v296, %v297
      %v299 = vlog2.pop %v291
      %v300 = vmul.f32 %v299, 0.6931472
      %v301 = vlog2.pop %v298
      %v302 = vmul.f32 %v301, 0.6931472
      %v303 = vlaneseq
      %v304 = vshrl.u32 %v303, 7
      %v305 = vlaneseq
      %v306 = vshrl.u32 %v305, 7
      %v307 = vsub.s32 0, %v306
      %v308 = vrot.slane %v256, %v307
      %v309 = vlaneseq
      %v310 = vshrl.u32 %v309, 7
      %v311 = vsub.s32 1, %v310
      %v312 = vrot.slane %v256, %v311
      %vm313 = vcmp.eq.s32.totalorder %v304, %v308
      %vm314 = vcmp.eq.s32.totalorder %v304, %v312
      %v315 = vsel %vm313, 1, 0
      %v316 = vsel %vm314, 1, 0
      %v317 = vcvt.s32.f32 %v315
      %v318 = vcvt.s32.f32 %v316
      %v321 = vcombine.low %v317, %v318
      %v323 = vmul.f32 %v279, %v321
      %v325 = vcombine.high %v323, %v323
      %v327 = vsel %vm260, %v323, 0.0
      %v328 = vrot.slane %v327, 4
      %v329 = vadd.f32 %v327, %v328
      %v330 = vrot.slane %v329, 2
      %v331 = vadd.f32 %v329, %v330
      %v332 = vrot.slane %v331, 1
      %v333 = vadd.f32 %v331, %v332
      %v334 = vsel %vm260, %v325, 0.0
      %v335 = vrot.slane %v334, 4
      %v336 = vadd.f32 %v334, %v335
      %v337 = vrot.slane %v336, 2
      %v338 = vadd.f32 %v336, %v337
      %v339 = vrot.slane %v338, 1
      %v340 = vadd.f32 %v338, %v339
      %v342 = vcombine.high %v279, %v279
      %v344 = vsel %vm260, %v279, 0.0
      %v345 = vrot.slane %v344, 4
      %v346 = vadd.f32 %v344, %v345
      %v347 = vrot.slane %v346, 2
      %v348 = vadd.f32 %v346, %v347
      %v349 = vrot.slane %v348, 1
      %v350 = vadd.f32 %v348, %v349
      %v351 = vsel %vm260, %v342, 0.0
      %v352 = vrot.slane %v351, 4
      %v353 = vadd.f32 %v351, %v352
      %v354 = vrot.slane %v353, 2
      %v355 = vadd.f32 %v353, %v354
      %v356 = vrot.slane %v355, 1
      %v357 = vadd.f32 %v355, %v356
      %v358 = vld [vmem:[#allocation2] sm:$0x3]
      %v359 = vmul.f32 %v350, 0.0125
      %v360 = vmul.f32 %v357, 0.0125
      %v361 = vsub.f32 %v300, %v359
      %v362 = vsub.f32 %v302, %v360
      %v365 = vcombine.low %v361, %v362
      %v367 = vunpack.c.l.s4 1966171168
      %v368 = vunpack.c.0.s8 %v367
      %v369 = vlaneseq
      %v370 = vshrl.u32 %v369, 7
      %v371 = vsub.s32 %v368, %v370
      %v372 = vrot.slane %v365, %v371
      %v374 = vunpack.c.l.s4 1966171168
      %v375 = vunpack.c.0.s8 %v374
      %v376 = vlaneseq
      %v377 = vshrl.u32 %v376, 7
      %v378 = vsub.s32 %v375, %v377
      %v379 = vrot.slane %v372, %v378
      %v381 = vmul.f32 %v255, %v379
      %v382 = vmul.f32 %v333, 0.95
      %v383 = vmul.f32 %v340, 0.95
      %v386 = vcombine.low %v382, %v383
      %v388 = vunpack.c.l.s4 1966171168
      %v389 = vunpack.c.0.s8 %v388
      %v390 = vlaneseq
      %v391 = vshrl.u32 %v390, 7
      %v392 = vsub.s32 %v389, %v391
      %v393 = vrot.slane %v386, %v392
      %v395 = vunpack.c.l.s4 1966171168
      %v396 = vunpack.c.0.s8 %v395
      %v397 = vlaneseq
      %v398 = vshrl.u32 %v397, 7
      %v399 = vsub.s32 %v396, %v398
      %v400 = vrot.slane %v393, %v399
      %v402 = vsub.f32 %v381, %v400
      %v403 = vadd.f32 %v358, %v402
      %v404 = vlaneseq
      %vm405 = vcmp.ge.s32.totalorder %v404, 0
      %vm406 = vcmp.lt.s32.totalorder %v404, 256
      %vm407 = vmand %vm405, %vm406
      %408 = vst.msk [vmem:[#allocation2] sm:$0x3] %vm407, %v403
      %v409 = vrcp.pop %v291
      %v410 = vrcp.pop %v298
      %v413 = vcombine.low %v409, %v410
      %v415 = vunpack.c.l.s4 1966171168
      %v416 = vunpack.c.0.s8 %v415
      %v417 = vlaneseq
      %v418 = vshrl.u32 %v417, 7
      %v419 = vsub.s32 %v416, %v418
      %v420 = vrot.slane %v413, %v419
      %v422 = vunpack.c.l.s4 1966171168
      %v423 = vunpack.c.0.s8 %v422
      %v424 = vlaneseq
      %v425 = vshrl.u32 %v424, 7
      %v426 = vsub.s32 %v423, %v425
      %v427 = vrot.slane %v420, %v426
      %v429 = vmul.f32 %v255, %v427
      %v431 = vlaneseq
      %v432 = vshrl.u32 %v431, 7
      %v433 = vsub.s32 0, %v432
      %v434 = vrot.slane %v429, %v433
      %v435 = vlaneseq
      %v436 = vshrl.u32 %v435, 7
      %v437 = vsub.s32 1, %v436
      %v438 = vrot.slane %v429, %v437
      %v439 = vcombine.low %v434, %v438
      %v441 = vmul.f32 %v281, %v439
      %v442 = vld [vmem:[#allocation3] sm:$0xff]
      %v443 = vmul.f32 %v441, %v321
      %v444 = vadd.f32 %v442, %v443
      %445 = vst [vmem:[#allocation3] sm:$0xff] %v444
      %v446 = vld [vmem:[#allocation4] sm:$0xff]
      %v447 = vadd.f32 %v446, %v441
      %448 = vst [vmem:[#allocation4] sm:$0xff] %v447
      %v449 = vld [vmem:[#allocation5] sm:$0xff]
      %v450 = vadd.f32 %v449, %v321
      %451 = vst [vmem:[#allocation5] sm:$0xff] %v450
      // Predicated region
      $region33: #{_banet_loss_impl.1} parent=27 // pred_check
        %p452 = pneg %p239
      $region34: #{_banet_loss_impl.1} parent=27 // pred_check_branch
        %454 = sbr.rel (%p452) target = $region36
      $region35: #{_banet_loss_impl.1} parent=27 // pred_region
        %v455 = vld [vmem:[#allocation2] sm:$0x3]
        %v457 = vlaneseq
        %v458 = vshrl.u32 %v457, 7
        %v459 = vsub.s32 0, %v458
        %v460 = vrot.slane %v455, %v459
        %v461 = vlaneseq
        %v462 = vshrl.u32 %v461, 7
        %v463 = vsub.s32 1, %v462
        %v464 = vrot.slane %v455, %v463
        %vm467 = vcmask 1040384
        %v468 = vsel %vm467, %v460, 0.0
        %v469 = vsel %vm467, %v464, 0.0
        %v470 = vadd.f32 %v468, %v469
        %471 = vadd.xlane.f32.xlu0 %v470
        %v472 = vpop.xlane.xlu0 %471
        %vm473 = vcmask 0
        %474 = vst.msk [vmem:[%s234] sm:$0x1] %vm473, %v472
        %v475 = vld [vmem:[#allocation3] sm:$0xff]
        %v477 = vcombine.high %v475, %v475
        %v479 = vsel %vm260, %v475, 0.0
        %v480 = vsel %vm260, %v477, 0.0
        %v481 = vadd.f32 %v479, %v480
        %482 = vadd.xlane.f32.xlu0 %v481
        %v483 = vpop.xlane.xlu0 %482
        %v484 = vld [vmem:[#allocation4] sm:$0xff]
        %v486 = vcombine.high %v484, %v484
        %v488 = vsel %vm260, %v484, 0.0
        %v489 = vsel %vm260, %v486, 0.0
        %v490 = vadd.f32 %v488, %v489
        %491 = vadd.xlane.f32.xlu0 %v490
        %v492 = vpop.xlane.xlu0 %491
        %v493 = vld [vmem:[#allocation5] sm:$0xff]
        %v495 = vcombine.high %v493, %v493
        %v497 = vsel %vm260, %v493, 0.0
        %v498 = vsel %vm260, %v495, 0.0
        %v499 = vadd.f32 %v497, %v498
        %500 = vadd.xlane.f32.xlu0 %v499
        %v501 = vpop.xlane.xlu0 %500
        %vm502 = vcmask 7168
        %v503 = vsel %vm502, %v483, %v492
        %vm504 = vcmask 15360
        %v505 = vsel %vm504, %v503, %v501
        %vm506 = vcmask 19456
        %507 = vst.msk [vmem:[%s238] sm:$0xf] %vm506, %v505
      $region36: #{_banet_loss_impl.1} parent=27 // pred_fallthru
        _
      %p508 = scmp.lt.s32.totalorder %s19, 1
      %s509 = scalar_select %p508, %s19, 1
      %s510 = scalar_lea.vmem %s2, %s509
      %p511 = scmp.lt.s32.totalorder %s19, 1
      %s512 = scalar_select %p511, %s19, 1
      %s513 = smul.addr %s512, 4
      %s514 = scalar_lea.vmem %s3, %s513
      // Predicated region
      $region37: #{_banet_loss_impl.1} parent=27 // pred_check
        %p515 = pneg %p101
      $region38: #{_banet_loss_impl.1} parent=27 // pred_check_branch
        %517 = sbr.rel (%p515) target = $region40
      $region39: #{_banet_loss_impl.1} parent=27 // pred_region
        _
      $region40: #{_banet_loss_impl.1} parent=27 // pred_fallthru
        _
      // Predicated region
      $region41: #{_banet_loss_impl.1} parent=27 // pred_check
        %p518 = pneg %p127
      $region42: #{_banet_loss_impl.1} parent=27 // pred_check_branch
        %520 = sbr.rel (%p518) target = $region44
      $region43: #{_banet_loss_impl.1} parent=27 // pred_region
        _
      $region44: #{_banet_loss_impl.1} parent=27 // pred_fallthru
        _
    $region28: #{_banet_loss_impl.1} parent=5 // pred_fallthru
      _
    %p521 = scmp.le.s32.totalorder 2, %s10
    // Predicated region
    $region45: #{_banet_loss_impl.1} parent=5 // pred_check
      %p522 = pneg %p521
    $region46: #{_banet_loss_impl.1} parent=5 // pred_check_branch
      %524 = sbr.rel (%p522) target = $region48
    $region47: #{_banet_loss_impl.1} parent=5 // pred_region
      %s525 = ssub.s32 %s10, 2
      // Predicated region
      $region49: #{_banet_loss_impl.1} parent=47 // pred_check
        %p526 = pneg %p107
      $region50: #{_banet_loss_impl.1} parent=47 // pred_check_branch
        %528 = sbr.rel (%p526) target = $region52
      $region51: #{_banet_loss_impl.1} parent=47 // pred_region
        %p529 = scmp.lt.s32.totalorder %s21, 1
        %s530 = scalar_select %p529, %s21, 1
        %s531 = scalar_lea.vmem %s2, %s530
      $region52: #{_banet_loss_impl.1} parent=47 // pred_fallthru
        _
      // Predicated region
      $region53: #{_banet_loss_impl.1} parent=47 // pred_check
        %p532 = pneg %p133
      $region54: #{_banet_loss_impl.1} parent=47 // pred_check_branch
        %534 = sbr.rel (%p532) target = $region56
      $region55: #{_banet_loss_impl.1} parent=47 // pred_region
        %p535 = scmp.lt.s32.totalorder %s21, 1
        %s536 = scalar_select %p535, %s21, 1
        %s537 = smul.addr %s536, 4
        %s538 = scalar_lea.vmem %s3, %s537
      $region56: #{_banet_loss_impl.1} parent=47 // pred_fallthru
        _
    $region48: #{_banet_loss_impl.1} parent=5 // pred_fallthru
      _
  $region6: #{_banet_loss_impl.1} parent=0 // loop_footer
    %s14 = sadd.s32 1, %s10
  $region7: #{_banet_loss_impl.1} parent=0 // loop_footer_branch
    %9 = sbr.rel target = $region3
  $region8: #{_banet_loss_impl.1} parent=0 // loop_exit
    _

</llo_original>
